<compile_context>
chip_gen: v5e
topology: v5e:2x2
jax: 0.10.0
libtpu: 0.0.40
codegen_flags: <defaults>
</compile_context>

<pallas_src>
import math
from collections import defaultdict

import jax
import jax.numpy as jnp
import numpy as np
from jax.experimental import pallas as pl
from jax.experimental.pallas import tpu as pltpu

# ----------------------------------------------------------------------------
# Static "descriptor" (deterministic, synthetic) -- segment mode "u,u,u".
# ----------------------------------------------------------------------------
U = 128                              # segment size (one lane width)
N_SEG = (3, 2, 3)                    # segments per operand (op0, op1, output)
D_OP = tuple(n * U for n in N_SEG)   # flat operand sizes: (384, 256, 384)

# paths: (segment index per operand, coefficient)
PATH_IDX = ((0, 0, 0),
            (1, 0, 1),
            (2, 1, 2),
            (0, 1, 1),
            (1, 1, 0),
            (2, 0, 2))
PATH_COEF = (1.0, 0.5, -0.25, 2.0, 0.75, 1.5)

# forward-time operand permutation (as in FusedTensorProductOp3.__init__):
# kernel operand j <- input x_{PERM[j]}
PERM = (1, 0)

MAX_TB = 2048        # row tile upper bound; 2048 fits every generation's VMEM limit
                     # (v5e/v6e could go 4096 with a higher vmem_limit; not on v7x)
SPLIT_ROWS = 1024    # once batch >= this, force >= 2 grid steps (v7x has 2 TensorCores)
MIN_GOOD_TB = 256    # don't bother with tiles smaller than this when searching

# static grouping of paths by output segment (done once, in Python)
_OUT_GROUPS = defaultdict(list)
for (_i0, _i1, _i2), _c in zip(PATH_IDX, PATH_COEF):
    _OUT_GROUPS[_i2].append((_i0, _i1, _c))


def _ceil_to(x, m):
    return ((x + m - 1) // m) * m


def _choose_tiling(batch, min_sub, max_tb=MAX_TB):
    """Pick (tile_rows, padded_rows).  padded_rows == batch whenever possible so the
    HBM pad round trip and the output slice copy are avoided entirely."""
    if batch <= max_tb:
        if batch >= SPLIT_ROWS and batch % (2 * min_sub) == 0:
            return batch // 2, batch        # two equal tiles -> both v7x cores busy
        return batch, batch                  # one full-extent tile (any row count)
    # batch > max_tb: tile rows must be a multiple of min_sub.  Minimize row padding,
    # tie-break toward the largest tile (amortizes the fixed per-step overhead).
    lo = max(MIN_GOOD_TB, min_sub)
    min_possible = _ceil_to(batch, min_sub)
    best_tb, best_pad, found = min_sub, min_possible, False
    t = (max_tb // min_sub) * min_sub
    while t >= lo:
        p = _ceil_to(batch, t)
        if not found or p < best_pad:
            best_tb, best_pad, found = t, p, True
            if p == min_possible:           # cannot do better than the minimal pad
                break
        t -= min_sub
    return best_tb, best_pad


# ----------------------------------------------------------------------------
# Pallas kernel: segmented multiply-accumulate, register accumulation,
# one lane-dense store per 128-lane output segment.
# ----------------------------------------------------------------------------
def _tp3_kernel(x0_ref, x1_ref, o_ref):
    rows = o_ref.shape[0]
    seg0, seg1 = {}, {}

    def get0(i):
        if i not in seg0:
            seg0[i] = x0_ref[:, i * U:(i + 1) * U].astype(jnp.float32)
        return seg0[i]

    def get1(i):
        if i not in seg1:
            seg1[i] = x1_ref[:, i * U:(i + 1) * U].astype(jnp.float32)
        return seg1[i]

    # Paths are compile-time static -> fully unrolled, static slices, register acc.
    # The path coefficient is applied to whichever factor has the fewer rows
    # (a (1, U) block when that operand is fully broadcast), so the scalar multiply
    # is not a full-width vmul.
    for i_out in range(N_SEG[2]):
        acc = None
        for (i0, i1, c) in _OUT_GROUPS.get(i_out, ()):
            a, b = get0(i0), get1(i1)
            cf = jnp.float32(c)
            term = (cf * a) * b if a.shape[0] <= b.shape[0] else a * (cf * b)
            acc = term if acc is None else acc + term
        if acc is None:
            acc = jnp.zeros((rows, U), jnp.float32)
        # broadcast handles the (theoretical) case of a (1, U) accumulator
        o_ref[:, i_out * U:(i_out + 1) * U] = (
            jnp.broadcast_to(acc, (rows, U)).astype(o_ref.dtype))


def fused_tensor_product_op3(x0, x1):
    """Forward pass equivalent of FusedTensorProductOp3.forward(x0, x1)."""
    # --- glue: permute, broadcast leading dims (lazily), flatten -------------
    xs = (x0, x1)
    y = [xs[p] for p in PERM]                                  # self._perm
    for j, t in enumerate(y):
        assert t.shape[-1] == D_OP[j], (t.shape, D_OP[j])
    shape = jnp.broadcast_shapes(*(t.shape[:-1] for t in y))   # broadcast_shapes
    batch = math.prod(shape)

    out_dtype = jnp.result_type(x0.dtype, x1.dtype)

    flat, is_bcast = [], []
    for t in y:
        lead = math.prod(t.shape[:-1]) if t.ndim > 1 else 1
        if lead == 1 and batch > 1:
            # fully-broadcast operand: keep un-replicated, broadcast inside kernel
            flat.append(t.reshape(1, t.shape[-1]))
            is_bcast.append(True)
        else:
            # TODO(synk): partially-broadcast operands (1 < lead < batch) are still
            # materialized to (batch, D) here; expressing the replication in the
            # BlockSpec index_map would cut that operand's HBM reads by the
            # replication factor.
            flat.append(jnp.broadcast_to(t, shape + (t.shape[-1],))
                        .reshape(batch, t.shape[-1]))
            is_bcast.append(False)

    # --- row tile: as large as possible, avoiding any row padding if we can --
    sub_req = {4: 8, 2: 16, 1: 32}
    min_sub = max(sub_req[jnp.dtype(t.dtype).itemsize] for t in flat)
    min_sub = max(min_sub, sub_req[jnp.dtype(out_dtype).itemsize])

    tb, padded = _choose_tiling(batch, min_sub)

    if padded != batch:
        # fallback only for awkward batch sizes (> MAX_TB and not nicely tileable):
        # costs one extra HBM round trip of the non-broadcast inputs.
        flat = [f if bc else jnp.pad(f, ((0, padded - f.shape[0]), (0, 0)))
                for f, bc in zip(flat, is_bcast)]

    in_specs = []
    for bc, d in zip(is_bcast, D_OP[:2]):
        if bc:
            in_specs.append(pl.BlockSpec((1, d), lambda b: (0, 0)))
        else:
            in_specs.append(pl.BlockSpec((tb, d), lambda b: (b, 0)))

    # advisory cost for XLA's scheduler (HBM-bandwidth-bound elementwise kernel)
    bytes_accessed = sum(int(f.size) * f.dtype.itemsize for f in flat)
    bytes_accessed += padded * D_OP[2] * jnp.dtype(out_dtype).itemsize
    flops = padded * len(PATH_IDX) * U * 2

    # --- Pallas call ---------------------------------------------------------
    out_flat = pl.pallas_call(
        _tp3_kernel,
        out_shape=jax.ShapeDtypeStruct((padded, D_OP[2]), out_dtype),
        grid_spec=pltpu.PrefetchScalarGridSpec(
            num_scalar_prefetch=0,
            grid=(padded // tb,),
            in_specs=in_specs,
            out_specs=pl.BlockSpec((tb, D_OP[2]), lambda b: (b, 0)),
        ),
        compiler_params=pltpu.CompilerParams(
            dimension_semantics=("parallel",),
            # TB=2048 double-buffered needs ~16-17 MiB; 32 MiB is safe on every
            # generation (incl. v7x's 64 MiB physical VMEM).
            vmem_limit_bytes=32 << 20,
        ),
        cost_estimate=pl.CostEstimate(flops=flops, transcendentals=0,
                                      bytes_accessed=bytes_accessed),
    )(*flat)

    if padded != batch:
        out_flat = out_flat[:batch]
    return out_flat.reshape(shape + (D_OP[2],))


# ----------------------------------------------------------------------------
# Pure-JAX reference (for correctness check).
# ----------------------------------------------------------------------------
def _reference(x0, x1):
    xs = (x0, x1)
    y = [xs[p] for p in PERM]
    shape = jnp.broadcast_shapes(*(t.shape[:-1] for t in y))
    batch = math.prod(shape)
    y = [jnp.broadcast_to(t, shape + (t.shape[-1],))
         .reshape(batch, t.shape[-1]).astype(jnp.float32) for t in y]
    out = jnp.zeros((batch, D_OP[2]), jnp.float32)
    for (i0, i1, i2), c in zip(PATH_IDX, PATH_COEF):
        out = out.at[:, i2 * U:(i2 + 1) * U].add(
            c * y[0][:, i0 * U:(i0 + 1) * U] * y[1][:, i1 * U:(i1 + 1) * U])
    return out.reshape(shape + (D_OP[2],)).astype(jnp.result_type(x0.dtype, x1.dtype))


if __name__ == "__main__":
    key = jax.random.PRNGKey(0)
    k0, k1, k2, k3 = jax.random.split(key, 4)

    # case 1: fully-broadcast second input (exercises the (1, D) block path).
    # last dims must match the *permuted* operand sizes:
    #   x0 -> operand PERM.index(0)=1 (D=256), x1 -> operand 0 (D=384)
    x0 = jax.random.normal(k0, (2, 8, 256), dtype=jnp.float32)
    x1 = jax.random.normal(k1, (1, 1, 384), dtype=jnp.float32)
    out = jax.block_until_ready(fused_tensor_product_op3(x0, x1))
    ref = jax.block_until_ready(_reference(x0, x1))
    assert out.shape == (2, 8, D_OP[2]), out.shape
    np.testing.assert_allclose(np.asarray(out), np.asarray(ref), rtol=1e-5, atol=1e-5)

    # case 2: ragged (non-multiple-of-8) batch with a partially-broadcast operand
    # (exercises the full-extent single-tile, no-padding path).
    x0b = jax.random.normal(k2, (3, 5, 256), dtype=jnp.float32)
    x1b = jax.random.normal(k3, (3, 1, 384), dtype=jnp.float32)
    outb = jax.block_until_ready(fused_tensor_product_op3(x0b, x1b))
    refb = jax.block_until_ready(_reference(x0b, x1b))
    assert outb.shape == (3, 5, D_OP[2]), outb.shape
    np.testing.assert_allclose(np.asarray(outb), np.asarray(refb), rtol=1e-5, atol=1e-5)

    print("KERNEL_OK")
</pallas_src>

<mosaic_0001>
module attributes {stable_mosaic.version = 11 : i64} {
  func.func @_tp3_kernel(%arg0: i32, %arg1: memref<1x384xf32, #tpu.memory_space<vmem>>, %arg2: memref<16x256xf32, #tpu.memory_space<vmem>>, %arg3: memref<16x384xf32, #tpu.memory_space<vmem>>) attributes {dimension_semantics = [#tpu.dimension_semantics<parallel>], iteration_bounds = array<i64: 1>, scalar_prefetch = 0 : i64, scratch_operands = 0 : i64, tpu.core_type = #tpu.core_type<tc>, window_params = [{pipeline_mode = #tpu.pipeline_mode<synchronous>, transform_indices = @transform_0, window_bounds = array<i64: 1, 384>}, {transform_indices = @transform_1, window_bounds = array<i64: 16, 256>}, {transform_indices = @transform_2, window_bounds = array<i64: 16, 384>}]} {
    %c0 = arith.constant 0 : index
    %c0_0 = arith.constant 0 : index
    %0 = vector.load %arg1[%c0, %c0_0] : memref<1x384xf32, #tpu.memory_space<vmem>>, vector<1x128xf32>
    %c0_1 = arith.constant 0 : index
    %c0_2 = arith.constant 0 : index
    %1 = vector.load %arg2[%c0_1, %c0_2] : memref<16x256xf32, #tpu.memory_space<vmem>>, vector<16x128xf32>
    %cst = arith.constant 1.000000e+00 : f32
    %2 = vector.broadcast %cst : f32 to vector<1x128xf32>
    %3 = arith.mulf %2, %0 : vector<1x128xf32>
    %4 = vector.broadcast %3 : vector<1x128xf32> to vector<16x128xf32>
    %5 = arith.mulf %4, %1 : vector<16x128xf32>
    %c0_3 = arith.constant 0 : index
    %c128 = arith.constant 128 : index
    %6 = vector.load %arg1[%c0_3, %c128] : memref<1x384xf32, #tpu.memory_space<vmem>>, vector<1x128xf32>
    %c0_4 = arith.constant 0 : index
    %c128_5 = arith.constant 128 : index
    %7 = vector.load %arg2[%c0_4, %c128_5] : memref<16x256xf32, #tpu.memory_space<vmem>>, vector<16x128xf32>
    %cst_6 = arith.constant 7.500000e-01 : f32
    %8 = vector.broadcast %cst_6 : f32 to vector<1x128xf32>
    %9 = arith.mulf %8, %6 : vector<1x128xf32>
    %10 = vector.broadcast %9 : vector<1x128xf32> to vector<16x128xf32>
    %11 = arith.mulf %10, %7 : vector<16x128xf32>
    %12 = arith.addf %5, %11 : vector<16x128xf32>
    %c0_7 = arith.constant 0 : index
    %c0_8 = arith.constant 0 : index
    %13 = vector.load %arg3[%c0_7, %c0_8] : memref<16x384xf32, #tpu.memory_space<vmem>>, vector<16x128xf32>
    tpu.vector_store %arg3[%c0_7, %c0_8], %12 {strides = array<i32>} : memref<16x384xf32, #tpu.memory_space<vmem>>, vector<16x128xf32>,
    %cst_9 = arith.constant 5.000000e-01 : f32
    %14 = vector.broadcast %cst_9 : f32 to vector<1x128xf32>
    %15 = arith.mulf %14, %6 : vector<1x128xf32>
    %16 = vector.broadcast %15 : vector<1x128xf32> to vector<16x128xf32>
    %17 = arith.mulf %16, %1 : vector<16x128xf32>
    %cst_10 = arith.constant 2.000000e+00 : f32
    %18 = vector.broadcast %cst_10 : f32 to vector<1x128xf32>
    %19 = arith.mulf %18, %0 : vector<1x128xf32>
    %20 = vector.broadcast %19 : vector<1x128xf32> to vector<16x128xf32>
    %21 = arith.mulf %20, %7 : vector<16x128xf32>
    %22 = arith.addf %17, %21 : vector<16x128xf32>
    %c0_11 = arith.constant 0 : index
    %c128_12 = arith.constant 128 : index
    %23 = vector.load %arg3[%c0_11, %c128_12] : memref<16x384xf32, #tpu.memory_space<vmem>>, vector<16x128xf32>
    tpu.vector_store %arg3[%c0_11, %c128_12], %22 {strides = array<i32>} : memref<16x384xf32, #tpu.memory_space<vmem>>, vector<16x128xf32>,
    %c0_13 = arith.constant 0 : index
    %c256 = arith.constant 256 : index
    %24 = vector.load %arg1[%c0_13, %c256] : memref<1x384xf32, #tpu.memory_space<vmem>>, vector<1x128xf32>
    %cst_14 = arith.constant -2.500000e-01 : f32
    %25 = vector.broadcast %cst_14 : f32 to vector<1x128xf32>
    %26 = arith.mulf %25, %24 : vector<1x128xf32>
    %27 = vector.broadcast %26 : vector<1x128xf32> to vector<16x128xf32>
    %28 = arith.mulf %27, %7 : vector<16x128xf32>
    %cst_15 = arith.constant 1.500000e+00 : f32
    %29 = vector.broadcast %cst_15 : f32 to vector<1x128xf32>
    %30 = arith.mulf %29, %24 : vector<1x128xf32>
    %31 = vector.broadcast %30 : vector<1x128xf32> to vector<16x128xf32>
    %32 = arith.mulf %31, %1 : vector<16x128xf32>
    %33 = arith.addf %28, %32 : vector<16x128xf32>
    %c0_16 = arith.constant 0 : index
    %c256_17 = arith.constant 256 : index
    %34 = vector.load %arg3[%c0_16, %c256_17] : memref<16x384xf32, #tpu.memory_space<vmem>>, vector<16x128xf32>
    tpu.vector_store %arg3[%c0_16, %c256_17], %33 {strides = array<i32>} : memref<16x384xf32, #tpu.memory_space<vmem>>, vector<16x128xf32>,
    return
  }
  func.func @transform_0(%arg0: i32) -> (i32, i32) {
    %c0_i32 = arith.constant 0 : i32
    %c0_i32_0 = arith.constant 0 : i32
    %c0_i32_1 = arith.constant 0 : i32
    return %c0_i32, %c0_i32_0 : i32, i32
  }
  func.func @transform_1(%arg0: i32) -> (i32, i32) {
    %c0_i32 = arith.constant 0 : i32
    %c0_i32_0 = arith.constant 0 : i32
    return %arg0, %c0_i32 : i32, i32
  }
  func.func @transform_2(%arg0: i32) -> (i32, i32) {
    %c0_i32 = arith.constant 0 : i32
    %c0_i32_0 = arith.constant 0 : i32
    return %arg0, %c0_i32 : i32, i32
  }
}

</mosaic_0001>

<llo_original>
// kernel: tpu_custom_call.1
$region0: #{tpu_custom_call.1}
  #allocation0 [shape = 'u32[]', space=smem, size = 0x4, offset = 0x4, fixed_abs, tag = 'smem constant byte address 0x4 - core index']
  #allocation1 [shape = 'u32[72,128]{1,0:T(1,128)}', space=vmem, size = 0x9000, scoped, tag = 'internal scratch']
  %s0 = inlined_call_operand.hbm [shape: f32[1,384], index: 0, kind: input, shape index: {}]
  %s1 = inlined_call_operand.hbm [shape: f32[16,256], index: 1, kind: input, shape index: {}]
  %s2 = inlined_call_operand.hbm [shape: f32[16,384], index: 2, kind: output, shape index: {}]
  %s3 = sld [smem:[#allocation0]]
  $region26: #{tpu_custom_call.1} parent=0
    _
  %s5 = ssub.s32 1, %s3
  %s6 = scalar_select 0, %s5, %s3
  $region1: #{tpu_custom_call.1} parent=0
    #allocation2 [shape = 'u8[1536]{0}', space=vmem, size = 0x800, scoped, tag = 'input window, operand 0, single buffered']
    #allocation3 [shape = 's32[1]{0}', space=sflag, size = 0x4, scoped, tag = 'scoped memory for tpu_custom_call.1']
    #allocation4 [shape = 's32[1]{0}', space=sflag, size = 0x4, scoped, tag = 'scoped memory for tpu_custom_call.1']
    #allocation5 [shape = 'u8[16384]{0}', space=vmem, size = 0x4000, scoped, tag = 'input window, operand 1, single buffered']
    #allocation6 [shape = 's32[1]{0}', space=sflag, size = 0x4, scoped, tag = 'scoped memory for tpu_custom_call.1']
    #allocation7 [shape = 'u8[24576]{0}', space=vmem, size = 0x6000, scoped, tag = 'output window, operand 0, single buffered']
    %7 = vsyncpa [#allocation3], 0
    %8 = vsyncpa [#allocation6], 0
    %9 = vsyncpa [#allocation4], 0
    // Predicated region
    $region2: #{tpu_custom_call.1} parent=1 // pred_check
      _
    $region3: #{tpu_custom_call.1} parent=1 // pred_check_branch
      %11 = sbr.rel (0) target = $region5
    $region4: #{tpu_custom_call.1} parent=1 // pred_region
      %13 = vsyncadd [#allocation3], 0
      %s15 = sshll.u32 %s0, 4
      %s16 = int_to_ptr.hbm [resolvable:$true] %s15
      %s17 = sshll.u32 [#allocation2], 4
      %s18 = int_to_ptr.vmem [resolvable:$true] %s17
      %20 = dma.hbm_to_vmem [thread:$0]  %s16, 48, %s18, [#allocation3]
    $region5: #{tpu_custom_call.1} parent=1 // pred_fallthru
      _
    // Predicated region
    $region6: #{tpu_custom_call.1} parent=1 // pred_check
      _
    $region7: #{tpu_custom_call.1} parent=1 // pred_check_branch
      %22 = sbr.rel (0) target = $region9
    $region8: #{tpu_custom_call.1} parent=1 // pred_region
      %24 = vsyncadd [#allocation6], 0
      %s25 = sshll.u32 %s1, 4
      %s26 = int_to_ptr.hbm [resolvable:$true] %s25
      %s27 = sshll.u32 [#allocation5], 4
      %s28 = int_to_ptr.vmem [resolvable:$true] %s27
      %33 = dma.hbm_to_vmem [thread:$0]  %s26, 512, %s28, [#allocation6], 256, 256, 16
    $region9: #{tpu_custom_call.1} parent=1 // pred_fallthru
      _
    // Predicated region
    $region10: #{tpu_custom_call.1} parent=1 // pred_check
      _
    $region11: #{tpu_custom_call.1} parent=1 // pred_check_branch
      %35 = sbr.rel (0) target = $region13
    $region12: #{tpu_custom_call.1} parent=1 // pred_region
      %37 = dma.done [#allocation3], 48
    $region13: #{tpu_custom_call.1} parent=1 // pred_fallthru
      _
    // Predicated region
    $region14: #{tpu_custom_call.1} parent=1 // pred_check
      _
    $region15: #{tpu_custom_call.1} parent=1 // pred_check_branch
      %39 = sbr.rel (0) target = $region17
    $region16: #{tpu_custom_call.1} parent=1 // pred_region
      %41 = dma.done [#allocation6], 512
    $region17: #{tpu_custom_call.1} parent=1 // pred_fallthru
      _
    %v42 = vld [vmem:[#allocation2] sm:$0x1]
    %v43 = vld [vmem:[#allocation5] sm:$0xff]
    %v44 = vld [vmem:[#allocation5 + $0x10] sm:$0xff]
    %v46 = vperm.slane %v42, 0
    %v48 = vmul.f32 %v46, %v43
    %v49 = vmul.f32 %v46, %v44
    %v50 = vld [vmem:[#allocation2 + $0x1] sm:$0x1]
    %v51 = vld [vmem:[#allocation5 + $0x8] sm:$0xff]
    %v52 = vld [vmem:[#allocation5 + $0x18] sm:$0xff]
    %v53 = vmul.f32 %v50, 0.75
    %v55 = vperm.slane %v53, 0
    %v57 = vmul.f32 %v55, %v51
    %v58 = vmul.f32 %v55, %v52
    %v59 = vadd.f32 %v48, %v57
    %v60 = vadd.f32 %v49, %v58
    %61 = vst [vmem:[#allocation7] sm:$0xff] %v59
    %62 = vst [vmem:[#allocation7 + $0x18] sm:$0xff] %v60
    %v63 = vmul.f32 %v50, 0.5
    %v65 = vperm.slane %v63, 0
    %v67 = vmul.f32 %v65, %v43
    %v68 = vmul.f32 %v65, %v44
    %v69 = vmul.f32 %v42, 2.0
    %v71 = vperm.slane %v69, 0
    %v73 = vmul.f32 %v71, %v51
    %v74 = vmul.f32 %v71, %v52
    %v75 = vadd.f32 %v67, %v73
    %v76 = vadd.f32 %v68, %v74
    %77 = vst [vmem:[#allocation7 + $0x8] sm:$0xff] %v75
    %78 = vst [vmem:[#allocation7 + $0x20] sm:$0xff] %v76
    %v79 = vld [vmem:[#allocation2 + $0x2] sm:$0x1]
    %v80 = vmul.f32 %v79, -0.25
    %v82 = vperm.slane %v80, 0
    %v84 = vmul.f32 %v82, %v51
    %v85 = vmul.f32 %v82, %v52
    %v86 = vmul.f32 %v79, 1.5
    %v88 = vperm.slane %v86, 0
    %v90 = vmul.f32 %v88, %v43
    %v91 = vmul.f32 %v88, %v44
    %v92 = vadd.f32 %v84, %v90
    %v93 = vadd.f32 %v85, %v91
    %94 = vst [vmem:[#allocation7 + $0x10] sm:$0xff] %v92
    %95 = vst [vmem:[#allocation7 + $0x28] sm:$0xff] %v93
    // Predicated region
    $region18: #{tpu_custom_call.1} parent=1 // pred_check
      _
    $region19: #{tpu_custom_call.1} parent=1 // pred_check_branch
      %97 = sbr.rel (0) target = $region21
    $region20: #{tpu_custom_call.1} parent=1 // pred_region
      %99 = vsyncadd [#allocation4], 0
      %s100 = sshll.u32 [#allocation7], 4
      %s101 = int_to_ptr.vmem [resolvable:$true] %s100
      %s102 = sshll.u32 %s2, 4
      %s103 = int_to_ptr.hbm [resolvable:$true] %s102
      %108 = dma.vmem_to_hbm [thread:$0]  %s101, 768, %s103, [#allocation4], 384, 384, 24
    $region21: #{tpu_custom_call.1} parent=1 // pred_fallthru
      _
    // Predicated region
    $region22: #{tpu_custom_call.1} parent=1 // pred_check
      _
    $region23: #{tpu_custom_call.1} parent=1 // pred_check_branch
      %110 = sbr.rel (0) target = $region25
    $region24: #{tpu_custom_call.1} parent=1 // pred_region
      %112 = dma.done [#allocation4], 768
    $region25: #{tpu_custom_call.1} parent=1 // pred_fallthru
      _
    %113 = vsyncpa [#allocation3], 1
    %114 = vsyncpa [#allocation6], 1
    %115 = vsyncpa [#allocation4], 1

</llo_original>
